<compile_context>
chip_gen: v6e
topology: v6e:2x2x1
jax: 0.10.0
libtpu: 0.0.40
codegen_flags: <defaults>
</compile_context>

<pallas_src>
import functools

import jax
import jax.numpy as jnp
from jax.experimental import pallas as pl
from jax.experimental.pallas import tpu as pltpu


def _mlp_kernel(x_ref, w1_ref, b1_ref, w2_ref, b2_ref, w3_ref, b3_ref, o_ref,
                *, matmul_dtype):
    """Fused forward for one (TILE_B, input_size) batch tile."""
    # In-kernel cast (no-op when matmul_dtype == f32); hidden under the
    # feature DMA, avoids a separate HBM pass in the wrapper.
    x = x_ref[...].astype(matmul_dtype)

    # Layer 1: input_size -> 64, ReLU  (MXU dot, f32 accumulate, f32 epilogue)
    h1 = jnp.dot(x, w1_ref[...], preferred_element_type=jnp.float32)
    h1 = jnp.maximum(h1 + b1_ref[...], 0.0)

    # Layer 2: 64 -> 32, ReLU
    h2 = jnp.dot(h1.astype(w2_ref.dtype), w2_ref[...],
                 preferred_element_type=jnp.float32)
    h2 = jnp.maximum(h2 + b2_ref[...], 0.0)

    # Layer 3: 32 -> 3, ReLU.  Tiny N=3 matmul is fully hidden behind the
    # feature DMA; not worth padding/folding to the VPU.
    h3 = jnp.dot(h2.astype(w3_ref.dtype), w3_ref[...],
                 preferred_element_type=jnp.float32)
    h3 = jnp.maximum(h3 + b3_ref[...], 0.0)

    o_ref[...] = h3.astype(o_ref.dtype)


def _round_up(n, m):
    return ((n + m - 1) // m) * m


def _padded_tile_bytes(rows, cols, itemsize):
    """VMEM footprint of one (rows, cols) tile after (sublane, lane) padding."""
    return _round_up(max(rows, 1), 16) * _round_up(max(cols, 1), 128) * itemsize


def _choose_tile_b(B, in_size, *, target_tile_bytes, max_tile_b):
    """Pick the batch tile from a byte budget on the lane-padded f32 tile."""
    padded_in = _round_up(in_size, 128)
    rows = target_tile_bytes // (padded_in * 4)          # features stream as f32
    rows = max(16, (rows // 16) * 16)                    # bf16 sublane friendly
    rows = min(rows, max_tile_b)
    if B >= 64:
        # v7x megacore: keep at least 2 grid steps so both TCs stream data.
        rows = min(rows, _round_up(pl.cdiv(B, 2), 16))
    rows = min(rows, _round_up(B, 8))                    # don't exceed the batch
    return max(8, (rows // 8) * 8)


def rotation_strategy_encoder(features, params, *,
                              matmul_dtype=jnp.float32,
                              max_tile_b=8192,
                              target_tile_bytes=4 << 20):
    """features: (B, input_size) float32.  params: dict of w1,b1,w2,b2,w3,b3.

    matmul_dtype: dtype fed to the MXU (f32 default = exact PyTorch semantics;
    bf16 optional).  Accumulation / bias / ReLU are always f32.
    """
    B, in_size = features.shape
    out_dim = params["w3"].shape[1]  # 3

    # Weights/biases: weights cast once (tiny, VMEM-resident); biases stay f32.
    w1 = params["w1"].astype(matmul_dtype)
    w2 = params["w2"].astype(matmul_dtype)
    w3 = params["w3"].astype(matmul_dtype)
    b1, b2, b3 = params["b1"], params["b2"], params["b3"]

    TILE_B = _choose_tile_b(B, in_size,
                            target_tile_bytes=target_tile_bytes,
                            max_tile_b=max_tile_b)
    grid = (pl.cdiv(B, TILE_B),)   # partial last block handled by Pallas OOB rules

    # --- explicit scoped-VMEM budget (padded, double-buffered footprints) ----
    w_itemsize = jnp.dtype(matmul_dtype).itemsize
    weight_bytes = 2 * sum(
        _padded_tile_bytes(a.shape[0], a.shape[1], it)
        for a, it in ((w1, w_itemsize), (w2, w_itemsize), (w3, w_itemsize),
                      (b1, 4), (b2, 4), (b3, 4)))
    feat_bytes = 2 * _padded_tile_bytes(TILE_B, in_size, 4)
    out_bytes = 2 * _padded_tile_bytes(TILE_B, out_dim, 4)
    vmem_limit = feat_bytes + out_bytes + weight_bytes + (4 << 20)
    vmem_limit = int(min(max(vmem_limit, 32 << 20), 56 << 20))

    # --- advisory cost estimate (memory-bound: bytes dominate) ---------------
    flops = 2 * B * (in_size * 64 + 64 * 32 + 32 * out_dim)
    bytes_accessed = (B * in_size * 4 + B * out_dim * 4
                      + sum(int(a.size) * int(a.dtype.itemsize)
                            for a in (w1, w2, w3, b1, b2, b3)))
    cost = pl.CostEstimate(flops=flops, transcendentals=0,
                           bytes_accessed=bytes_accessed)

    def const_spec(shape):
        return pl.BlockSpec(shape, lambda i: (0,) * len(shape))

    kernel = functools.partial(_mlp_kernel, matmul_dtype=matmul_dtype)

    out = pl.pallas_call(
        kernel,
        out_shape=jax.ShapeDtypeStruct((B, out_dim), jnp.float32),
        grid_spec=pl.GridSpec(
            grid=grid,
            in_specs=[
                pl.BlockSpec((TILE_B, in_size), lambda i: (i, 0)),  # features
                const_spec(w1.shape), const_spec(b1.shape),         # resident
                const_spec(w2.shape), const_spec(b2.shape),
                const_spec(w3.shape), const_spec(b3.shape),
            ],
            out_specs=pl.BlockSpec((TILE_B, out_dim), lambda i: (i, 0)),
        ),
        compiler_params=pltpu.CompilerParams(
            dimension_semantics=("parallel",),   # megacore sharding on v7x
            vmem_limit_bytes=vmem_limit),
        cost_estimate=cost,
    )(features, w1, b1, w2, b2, w3, b3)

    return out


def init_params(key, input_size):
    """nn.Linear-style init U(-1/sqrt(fan_in), 1/sqrt(fan_in)).

    Weights stored as (in_features, out_features) == PyTorch W.T.
    Biases stored as (1, out_features) for clean 2-D broadcasting in-kernel.
    """
    dims = [(input_size, 64), (64, 32), (32, 3)]
    params = {}
    for i, (fan_in, fan_out) in enumerate(dims, start=1):
        key, kw, kb = jax.random.split(key, 3)
        bound = 1.0 / jnp.sqrt(jnp.float32(fan_in))
        params[f"w{i}"] = jax.random.uniform(
            kw, (fan_in, fan_out), jnp.float32, minval=-bound, maxval=bound)
        params[f"b{i}"] = jax.random.uniform(
            kb, (1, fan_out), jnp.float32, minval=-bound, maxval=bound)
    return params


def reference_forward(features, params):
    """Pure-JAX f32 reference identical to the PyTorch forward."""
    h = jnp.maximum(features @ params["w1"] + params["b1"], 0.0)
    h = jnp.maximum(h @ params["w2"] + params["b2"], 0.0)
    h = jnp.maximum(h @ params["w3"] + params["b3"], 0.0)
    return h


if __name__ == "__main__":
    key = jax.random.PRNGKey(0)
    key, kx, kp, kx2 = jax.random.split(key, 4)

    batch = 8
    input_size = 32  # kwargs['input_size']

    x = jax.random.normal(kx, (batch, input_size), jnp.float32)
    params = init_params(kp, input_size)
    ref = reference_forward(x, params)

    # 1) Default path: f32 matmuls, must match the PyTorch-equivalent reference.
    out_f32 = jax.block_until_ready(rotation_strategy_encoder(x, params))
    assert out_f32.shape == (batch, 3)
    assert jnp.allclose(out_f32, ref, atol=1e-5, rtol=1e-5), (
        f"f32 path max abs err {jnp.max(jnp.abs(out_f32 - ref))}")

    # 2) Perf option: bf16 MXU operands (cast in-kernel), f32 accumulation.
    out_bf16 = jax.block_until_ready(
        rotation_strategy_encoder(x, params, matmul_dtype=jnp.bfloat16))
    assert out_bf16.shape == (batch, 3)
    assert jnp.allclose(out_bf16, ref, atol=5e-2, rtol=5e-2), (
        f"bf16 path max abs err {jnp.max(jnp.abs(out_bf16 - ref))}")

    # 3) Ragged batch / multi-step grid: B=20 with TILE_B=8 -> partial last
    #    block, no wrapper-side padding pass.
    x2 = jax.random.normal(kx2, (20, input_size), jnp.float32)
    ref2 = reference_forward(x2, params)
    out2 = jax.block_until_ready(
        rotation_strategy_encoder(x2, params, max_tile_b=8))
    assert out2.shape == (20, 3)
    assert jnp.allclose(out2, ref2, atol=1e-5, rtol=1e-5), (
        f"tiled path max abs err {jnp.max(jnp.abs(out2 - ref2))}")

    print("KERNEL_OK")
</pallas_src>

<mosaic_0001>
module attributes {stable_mosaic.version = 11 : i64} {
  func.func @_mlp_kernel(%arg0: i32, %arg1: memref<8x32xf32, #tpu.memory_space<vmem>>, %arg2: memref<32x64xf32, #tpu.memory_space<vmem>>, %arg3: memref<1x64xf32, #tpu.memory_space<vmem>>, %arg4: memref<64x32xf32, #tpu.memory_space<vmem>>, %arg5: memref<1x32xf32, #tpu.memory_space<vmem>>, %arg6: memref<32x3xf32, #tpu.memory_space<vmem>>, %arg7: memref<1x3xf32, #tpu.memory_space<vmem>>, %arg8: memref<8x3xf32, #tpu.memory_space<vmem>>) attributes {dimension_semantics = [#tpu.dimension_semantics<parallel>], iteration_bounds = array<i64: 1>, scalar_prefetch = 0 : i64, scratch_operands = 0 : i64, tpu.core_type = #tpu.core_type<tc>, window_params = [{transform_indices = @transform_0, window_bounds = array<i64: 8, 32>}, {pipeline_mode = #tpu.pipeline_mode<synchronous>, transform_indices = @transform_1, window_bounds = array<i64: 32, 64>}, {pipeline_mode = #tpu.pipeline_mode<synchronous>, transform_indices = @transform_2, window_bounds = array<i64: 1, 64>}, {pipeline_mode = #tpu.pipeline_mode<synchronous>, transform_indices = @transform_3, window_bounds = array<i64: 64, 32>}, {pipeline_mode = #tpu.pipeline_mode<synchronous>, transform_indices = @transform_4, window_bounds = array<i64: 1, 32>}, {pipeline_mode = #tpu.pipeline_mode<synchronous>, transform_indices = @transform_5, window_bounds = array<i64: 32, 3>}, {pipeline_mode = #tpu.pipeline_mode<synchronous>, transform_indices = @transform_6, window_bounds = array<i64: 1, 3>}, {transform_indices = @transform_7, window_bounds = array<i64: 8, 3>}]} {
    %c0 = arith.constant 0 : index
    %c0_0 = arith.constant 0 : index
    %0 = vector.load %arg1[%c0, %c0_0] : memref<8x32xf32, #tpu.memory_space<vmem>>, vector<8x32xf32>
    %c0_1 = arith.constant 0 : index
    %c0_2 = arith.constant 0 : index
    %1 = vector.load %arg2[%c0_1, %c0_2] : memref<32x64xf32, #tpu.memory_space<vmem>>, vector<32x64xf32>
    %cst = arith.constant dense<0.000000e+00> : vector<8x64xf32>
    %2 = tpu.matmul %0, %1, %cst {dimension_numbers = #tpu.dot_dimension_numbers<[1], [0], [0], [1], [0, 0, 1, 1], [], []>} : vector<8x32xf32>, vector<32x64xf32>, vector<8x64xf32> -> vector<8x64xf32>
    %c0_3 = arith.constant 0 : index
    %c0_4 = arith.constant 0 : index
    %3 = vector.load %arg3[%c0_3, %c0_4] : memref<1x64xf32, #tpu.memory_space<vmem>>, vector<1x64xf32>
    %4 = vector.broadcast %3 : vector<1x64xf32> to vector<8x64xf32>
    %5 = arith.addf %2, %4 : vector<8x64xf32>
    %cst_5 = arith.constant 0.000000e+00 : f32
    %6 = vector.broadcast %cst_5 : f32 to vector<8x64xf32>
    %7 = arith.maximumf %5, %6 : vector<8x64xf32>
    %c0_6 = arith.constant 0 : index
    %c0_7 = arith.constant 0 : index
    %8 = vector.load %arg4[%c0_6, %c0_7] : memref<64x32xf32, #tpu.memory_space<vmem>>, vector<64x32xf32>
    %cst_8 = arith.constant dense<0.000000e+00> : vector<8x32xf32>
    %9 = tpu.matmul %7, %8, %cst_8 {dimension_numbers = #tpu.dot_dimension_numbers<[1], [0], [0], [1], [0, 0, 1, 1], [], []>} : vector<8x64xf32>, vector<64x32xf32>, vector<8x32xf32> -> vector<8x32xf32>
    %c0_9 = arith.constant 0 : index
    %c0_10 = arith.constant 0 : index
    %10 = vector.load %arg5[%c0_9, %c0_10] : memref<1x32xf32, #tpu.memory_space<vmem>>, vector<1x32xf32>
    %11 = vector.broadcast %10 : vector<1x32xf32> to vector<8x32xf32>
    %12 = arith.addf %9, %11 : vector<8x32xf32>
    %cst_11 = arith.constant 0.000000e+00 : f32
    %13 = vector.broadcast %cst_11 : f32 to vector<8x32xf32>
    %14 = arith.maximumf %12, %13 : vector<8x32xf32>
    %c0_12 = arith.constant 0 : index
    %c0_13 = arith.constant 0 : index
    %15 = vector.load %arg6[%c0_12, %c0_13] : memref<32x3xf32, #tpu.memory_space<vmem>>, vector<32x3xf32>
    %cst_14 = arith.constant dense<0.000000e+00> : vector<8x3xf32>
    %16 = tpu.matmul %14, %15, %cst_14 {dimension_numbers = #tpu.dot_dimension_numbers<[1], [0], [0], [1], [0, 0, 1, 1], [], []>} : vector<8x32xf32>, vector<32x3xf32>, vector<8x3xf32> -> vector<8x3xf32>
    %c0_15 = arith.constant 0 : index
    %c0_16 = arith.constant 0 : index
    %17 = vector.load %arg7[%c0_15, %c0_16] : memref<1x3xf32, #tpu.memory_space<vmem>>, vector<1x3xf32>
    %18 = vector.broadcast %17 : vector<1x3xf32> to vector<8x3xf32>
    %19 = arith.addf %16, %18 : vector<8x3xf32>
    %cst_17 = arith.constant 0.000000e+00 : f32
    %20 = vector.broadcast %cst_17 : f32 to vector<8x3xf32>
    %21 = arith.maximumf %19, %20 : vector<8x3xf32>
    %c0_18 = arith.constant 0 : index
    %c0_19 = arith.constant 0 : index
    %22 = vector.load %arg8[%c0_18, %c0_19] : memref<8x3xf32, #tpu.memory_space<vmem>>, vector<8x3xf32>
    tpu.vector_store %arg8[%c0_18, %c0_19], %21 {strides = array<i32>} : memref<8x3xf32, #tpu.memory_space<vmem>>, vector<8x3xf32>,
    return
  }
  func.func @transform_0(%arg0: i32) -> (i32, i32) {
    %c0_i32 = arith.constant 0 : i32
    %c0_i32_0 = arith.constant 0 : i32
    return %arg0, %c0_i32 : i32, i32
  }
  func.func @transform_1(%arg0: i32) -> (i32, i32) {
    %c0_i32 = arith.constant 0 : i32
    %c0_i32_0 = arith.constant 0 : i32
    %c0_i32_1 = arith.constant 0 : i32
    return %c0_i32, %c0_i32_0 : i32, i32
  }
  func.func @transform_2(%arg0: i32) -> (i32, i32) {
    %c0_i32 = arith.constant 0 : i32
    %c0_i32_0 = arith.constant 0 : i32
    %c0_i32_1 = arith.constant 0 : i32
    return %c0_i32, %c0_i32_0 : i32, i32
  }
  func.func @transform_3(%arg0: i32) -> (i32, i32) {
    %c0_i32 = arith.constant 0 : i32
    %c0_i32_0 = arith.constant 0 : i32
    %c0_i32_1 = arith.constant 0 : i32
    return %c0_i32, %c0_i32_0 : i32, i32
  }
  func.func @transform_4(%arg0: i32) -> (i32, i32) {
    %c0_i32 = arith.constant 0 : i32
    %c0_i32_0 = arith.constant 0 : i32
    %c0_i32_1 = arith.constant 0 : i32
    return %c0_i32, %c0_i32_0 : i32, i32
  }
  func.func @transform_5(%arg0: i32) -> (i32, i32) {
    %c0_i32 = arith.constant 0 : i32
    %c0_i32_0 = arith.constant 0 : i32
    %c0_i32_1 = arith.constant 0 : i32
    return %c0_i32, %c0_i32_0 : i32, i32
  }
  func.func @transform_6(%arg0: i32) -> (i32, i32) {
    %c0_i32 = arith.constant 0 : i32
    %c0_i32_0 = arith.constant 0 : i32
    %c0_i32_1 = arith.constant 0 : i32
    return %c0_i32, %c0_i32_0 : i32, i32
  }
  func.func @transform_7(%arg0: i32) -> (i32, i32) {
    %c0_i32 = arith.constant 0 : i32
    %c0_i32_0 = arith.constant 0 : i32
    return %arg0, %c0_i32 : i32, i32
  }
}

</mosaic_0001>

<llo_original>
// kernel: tpu_custom_call.1
$region0: #{tpu_custom_call.1}
  #allocation0 [shape = 'u32[]', space=smem, size = 0x4, offset = 0x4, fixed_abs, tag = 'smem constant byte address 0x4 - core index']
  #allocation1 [shape = 'u32[144,128]{1,0:T(1,128)}', space=vmem, size = 0x12000, scoped, tag = 'internal scratch']
  %s0 = inlined_call_operand.vmem [shape: f32[8,32], index: 0, kind: input, shape index: {}]
  %s1 = inlined_call_operand.vmem [shape: f32[32,64], index: 1, kind: input, shape index: {}]
  %s2 = inlined_call_operand.vmem [shape: f32[1,64], index: 2, kind: input, shape index: {}]
  %s3 = inlined_call_operand.vmem [shape: f32[64,32], index: 3, kind: input, shape index: {}]
  %s4 = inlined_call_operand.vmem [shape: f32[1,32], index: 4, kind: input, shape index: {}]
  %s5 = inlined_call_operand.vmem [shape: f32[32,3], index: 5, kind: input, shape index: {}]
  %s6 = inlined_call_operand.vmem [shape: f32[1,3], index: 6, kind: input, shape index: {}]
  %s7 = inlined_call_operand.vmem [shape: f32[8,3], index: 7, kind: output, shape index: {}]
  %s8 = sld [smem:[#allocation0]]
  $region38: #{tpu_custom_call.1} parent=0
    _
  %s10 = ssub.s32 1, %s8
  %s11 = scalar_select 0, %s10, %s8
  // Predicated region
  $region2: #{tpu_custom_call.1} parent=0 // pred_check
    _
  $region3: #{tpu_custom_call.1} parent=0 // pred_check_branch
    %13 = sbr.rel (0) target = $region5
  $region4: #{tpu_custom_call.1} parent=0 // pred_region
    _
  $region5: #{tpu_custom_call.1} parent=0 // pred_fallthru
    _
  // Predicated region
  $region6: #{tpu_custom_call.1} parent=0 // pred_check
    _
  $region7: #{tpu_custom_call.1} parent=0 // pred_check_branch
    %15 = sbr.rel (0) target = $region9
  $region8: #{tpu_custom_call.1} parent=0 // pred_region
    _
  $region9: #{tpu_custom_call.1} parent=0 // pred_fallthru
    _
  // Predicated region
  $region10: #{tpu_custom_call.1} parent=0 // pred_check
    _
  $region11: #{tpu_custom_call.1} parent=0 // pred_check_branch
    %17 = sbr.rel (0) target = $region13
  $region12: #{tpu_custom_call.1} parent=0 // pred_region
    _
  $region13: #{tpu_custom_call.1} parent=0 // pred_fallthru
    _
  // Predicated region
  $region14: #{tpu_custom_call.1} parent=0 // pred_check
    _
  $region15: #{tpu_custom_call.1} parent=0 // pred_check_branch
    %19 = sbr.rel (0) target = $region17
  $region16: #{tpu_custom_call.1} parent=0 // pred_region
    _
  $region17: #{tpu_custom_call.1} parent=0 // pred_fallthru
    _
  // Predicated region
  $region18: #{tpu_custom_call.1} parent=0 // pred_check
    _
  $region19: #{tpu_custom_call.1} parent=0 // pred_check_branch
    %21 = sbr.rel (0) target = $region21
  $region20: #{tpu_custom_call.1} parent=0 // pred_region
    _
  $region21: #{tpu_custom_call.1} parent=0 // pred_fallthru
    _
  // Predicated region
  $region22: #{tpu_custom_call.1} parent=0 // pred_check
    _
  $region23: #{tpu_custom_call.1} parent=0 // pred_check_branch
    %23 = sbr.rel (0) target = $region25
  $region24: #{tpu_custom_call.1} parent=0 // pred_region
    _
  $region25: #{tpu_custom_call.1} parent=0 // pred_fallthru
    _
  // Predicated region
  $region26: #{tpu_custom_call.1} parent=0 // pred_check
    _
  $region27: #{tpu_custom_call.1} parent=0 // pred_check_branch
    %25 = sbr.rel (0) target = $region29
  $region28: #{tpu_custom_call.1} parent=0 // pred_region
    _
  $region29: #{tpu_custom_call.1} parent=0 // pred_fallthru
    _
  %v26 = vld [vmem:[%s0] sm:$0xff]
  %v27 = vld [vmem:[%s1] sm:$0xff]
  %v28 = vld [vmem:[%s1 + $0x8] sm:$0xff]
  %v29 = vld [vmem:[%s1 + $0x10] sm:$0xff]
  %v30 = vld [vmem:[%s1 + $0x18] sm:$0xff]
  %v31 = vld [vmem:[%s2] sm:$0x1]
  %v33 = vlaneseq
  %v34 = vshrl.u32 %v33, 7
  %v35 = vsub.s32 0, %v34
  %v36 = vrot.slane %v31, %v35
  %vm38 = vcmask 261120
  %v40 = vsel %vm38, %v26, 0
  %42 = vmatprep.subr.mxu0 0.0
  %43 = vmatpush1.msra.mxu0 0.0
  %44 = vmatprep.subr.mxu0 0.0
  %45 = vmatpush1.msra.mxu0 0.0
  %46 = vmatprep.subr.mxu0 0.0
  %47 = vmatpush1.msra.mxu0 0.0
  %48 = vmatprep.subr.mxu0 0.0
  %49 = vmatpush1.msra.mxu0 0.0
  %50 = vmatprep.subr.mxu0 0.0
  %51 = vmatpush1.msra.mxu0 0.0
  %52 = vmatprep.subr.mxu0 0.0
  %53 = vmatpush1.msra.mxu0 0.0
  %54 = vmatprep.subr.mxu0 0.0
  %55 = vmatpush1.msra.mxu0 0.0
  %56 = vmatprep.subr.mxu0 0.0
  %57 = vmatpush1.msra.mxu0 0.0
  %58 = vmatprep.subr.mxu0 0.0
  %59 = vmatpush1.msra.mxu0 0.0
  %60 = vmatprep.subr.mxu0 0.0
  %61 = vmatpush1.msra.mxu0 0.0
  %62 = vmatprep.subr.mxu0 0.0
  %63 = vmatpush1.msra.mxu0 0.0
  %64 = vmatprep.subr.mxu0 0.0
  %65 = vmatpush1.msra.mxu0 0.0
  %66 = vmatprep.subr.mxu0 0.0
  %67 = vmatpush1.msra.mxu0 %v30
  %68 = vmatprep.subr.mxu0 0.0
  %69 = vmatpush1.msra.mxu0 %v29
  %70 = vmatprep.subr.mxu0 0.0
  %71 = vmatpush1.msra.mxu0 %v28
  %72 = vmatprep.subr.mxu0 0.0
  %73 = vmatpush1.msra.mxu0 %v27
  %74 = vmatprep.subr.mxu0 0.0
  %75 = vmatpush2.msra.mxu0 0.0
  %76 = vmatprep.subr.mxu0 0.0
  %77 = vmatpush2.msra.mxu0 0.0
  %78 = vmatprep.subr.mxu0 0.0
  %79 = vmatpush2.msra.mxu0 0.0
  %80 = vmatprep.subr.mxu0 0.0
  %81 = vmatpush2.msra.mxu0 0.0
  %82 = vmatprep.subr.mxu0 0.0
  %83 = vmatpush2.msra.mxu0 0.0
  %84 = vmatprep.subr.mxu0 0.0
  %85 = vmatpush2.msra.mxu0 0.0
  %86 = vmatprep.subr.mxu0 0.0
  %87 = vmatpush2.msra.mxu0 0.0
  %88 = vmatprep.subr.mxu0 0.0
  %89 = vmatpush2.msra.mxu0 0.0
  %90 = vmatprep.subr.mxu0 0.0
  %91 = vmatpush2.msra.mxu0 0.0
  %92 = vmatprep.subr.mxu0 0.0
  %93 = vmatpush2.msra.mxu0 0.0
  %94 = vmatprep.subr.mxu0 0.0
  %95 = vmatpush2.msra.mxu0 0.0
  %96 = vmatprep.subr.mxu0 0.0
  %97 = vmatpush2.msra.mxu0 0.0
  %98 = vmatprep.subr.mxu0 0.0
  %99 = vmatpush2.msra.mxu0 0.0
  %100 = vmatprep.subr.mxu0 0.0
  %101 = vmatpush2.msra.mxu0 0.0
  %102 = vmatprep.subr.mxu0 0.0
  %103 = vmatpush2.msra.mxu0 0.0
  %104 = vmatprep.subr.mxu0 0.0
  %105 = vmatpush2.msra.mxu0 0.0
  %106 = vmatprep.mubr.f32.mxu0 0.0
  %107 = vmatmul.mubr.f32.gmra.mxu0 %v40
  %v108 = vpop.f32.mrf.mxu0
  %v109 = vadd.f32 %v36, %v108
  %v110 = vpop.f32.mrf.mxu0
  %111 = vdwg.mxu0
  %v112 = vmax.f32 %v109, 0.0
  %v113 = vld [vmem:[%s3] sm:$0xff]
  %v114 = vld [vmem:[%s3 + $0x8] sm:$0xff]
  %v115 = vld [vmem:[%s3 + $0x10] sm:$0xff]
  %v116 = vld [vmem:[%s3 + $0x18] sm:$0xff]
  %v117 = vld [vmem:[%s3 + $0x20] sm:$0xff]
  %v118 = vld [vmem:[%s3 + $0x28] sm:$0xff]
  %v119 = vld [vmem:[%s3 + $0x30] sm:$0xff]
  %v120 = vld [vmem:[%s3 + $0x38] sm:$0xff]
  %v121 = vld [vmem:[%s4] sm:$0x1]
  %v123 = vlaneseq
  %v124 = vshrl.u32 %v123, 7
  %v125 = vsub.s32 0, %v124
  %v126 = vrot.slane %v121, %v125
  %vm128 = vcmask 523264
  %v130 = vsel %vm128, %v112, 0
  %132 = vmatprep.subr.mxu0 0.0
  %133 = vmatpush1.msra.mxu0 0.0
  %134 = vmatprep.subr.mxu0 0.0
  %135 = vmatpush1.msra.mxu0 0.0
  %136 = vmatprep.subr.mxu0 0.0
  %137 = vmatpush1.msra.mxu0 0.0
  %138 = vmatprep.subr.mxu0 0.0
  %139 = vmatpush1.msra.mxu0 0.0
  %140 = vmatprep.subr.mxu0 0.0
  %141 = vmatpush1.msra.mxu0 0.0
  %142 = vmatprep.subr.mxu0 0.0
  %143 = vmatpush1.msra.mxu0 0.0
  %144 = vmatprep.subr.mxu0 0.0
  %145 = vmatpush1.msra.mxu0 0.0
  %146 = vmatprep.subr.mxu0 0.0
  %147 = vmatpush1.msra.mxu0 0.0
  %148 = vmatprep.subr.mxu0 0.0
  %149 = vmatpush1.msra.mxu0 %v120
  %150 = vmatprep.subr.mxu0 0.0
  %151 = vmatpush1.msra.mxu0 %v119
  %152 = vmatprep.subr.mxu0 0.0
  %153 = vmatpush1.msra.mxu0 %v118
  %154 = vmatprep.subr.mxu0 0.0
  %155 = vmatpush1.msra.mxu0 %v117
  %156 = vmatprep.subr.mxu0 0.0
  %157 = vmatpush1.msra.mxu0 %v116
  %158 = vmatprep.subr.mxu0 0.0
  %159 = vmatpush1.msra.mxu0 %v115
  %160 = vmatprep.subr.mxu0 0.0
  %161 = vmatpush1.msra.mxu0 %v114
  %162 = vmatprep.subr.mxu0 0.0
  %163 = vmatpush1.msra.mxu0 %v113
  %164 = vmatprep.subr.mxu0 0.0
  %165 = vmatpush2.msra.mxu0 0.0
  %166 = vmatprep.subr.mxu0 0.0
  %167 = vmatpush2.msra.mxu0 0.0
  %168 = vmatprep.subr.mxu0 0.0
  %169 = vmatpush2.msra.mxu0 0.0
  %170 = vmatprep.subr.mxu0 0.0
  %171 = vmatpush2.msra.mxu0 0.0
  %172 = vmatprep.subr.mxu0 0.0
  %173 = vmatpush2.msra.mxu0 0.0
  %174 = vmatprep.subr.mxu0 0.0
  %175 = vmatpush2.msra.mxu0 0.0
  %176 = vmatprep.subr.mxu0 0.0
  %177 = vmatpush2.msra.mxu0 0.0
  %178 = vmatprep.subr.mxu0 0.0
  %179 = vmatpush2.msra.mxu0 0.0
  %180 = vmatprep.subr.mxu0 0.0
  %181 = vmatpush2.msra.mxu0 0.0
  %182 = vmatprep.subr.mxu0 0.0
  %183 = vmatpush2.msra.mxu0 0.0
  %184 = vmatprep.subr.mxu0 0.0
  %185 = vmatpush2.msra.mxu0 0.0
  %186 = vmatprep.subr.mxu0 0.0
  %187 = vmatpush2.msra.mxu0 0.0
  %188 = vmatprep.subr.mxu0 0.0
  %189 = vmatpush2.msra.mxu0 0.0
  %190 = vmatprep.subr.mxu0 0.0
  %191 = vmatpush2.msra.mxu0 0.0
  %192 = vmatprep.subr.mxu0 0.0
  %193 = vmatpush2.msra.mxu0 0.0
  %194 = vmatprep.subr.mxu0 0.0
  %195 = vmatpush2.msra.mxu0 0.0
  %196 = vmatprep.mubr.f32.mxu0 0.0
  %197 = vmatmul.mubr.f32.gmra.mxu0 %v130
  %v198 = vpop.f32.mrf.mxu0
  %v199 = vadd.f32 %v126, %v198
  %v200 = vpop.f32.mrf.mxu0
  %201 = vdwg.mxu0
  %v202 = vmax.f32 %v199, 0.0
  %v203 = vld [vmem:[%s5] sm:$0xff]
  %v204 = vld [vmem:[%s5 + $0x8] sm:$0xff]
  %v205 = vld [vmem:[%s5 + $0x10] sm:$0xff]
  %v206 = vld [vmem:[%s5 + $0x18] sm:$0xff]
  %v207 = vld [vmem:[%s6] sm:$0x1]
  %v209 = vlaneseq
  %v210 = vshrl.u32 %v209, 7
  %v211 = vsub.s32 0, %v210
  %v212 = vrot.slane %v207, %v211
  %v215 = vsel %vm38, %v202, 0
  %217 = vmatprep.subr.mxu0 0.0
  %218 = vmatpush1.msra.mxu0 0.0
  %219 = vmatprep.subr.mxu0 0.0
  %220 = vmatpush1.msra.mxu0 0.0
  %221 = vmatprep.subr.mxu0 0.0
  %222 = vmatpush1.msra.mxu0 0.0
  %223 = vmatprep.subr.mxu0 0.0
  %224 = vmatpush1.msra.mxu0 0.0
  %225 = vmatprep.subr.mxu0 0.0
  %226 = vmatpush1.msra.mxu0 0.0
  %227 = vmatprep.subr.mxu0 0.0
  %228 = vmatpush1.msra.mxu0 0.0
  %229 = vmatprep.subr.mxu0 0.0
  %230 = vmatpush1.msra.mxu0 0.0
  %231 = vmatprep.subr.mxu0 0.0
  %232 = vmatpush1.msra.mxu0 0.0
  %233 = vmatprep.subr.mxu0 0.0
  %234 = vmatpush1.msra.mxu0 0.0
  %235 = vmatprep.subr.mxu0 0.0
  %236 = vmatpush1.msra.mxu0 0.0
  %237 = vmatprep.subr.mxu0 0.0
  %238 = vmatpush1.msra.mxu0 0.0
  %239 = vmatprep.subr.mxu0 0.0
  %240 = vmatpush1.msra.mxu0 0.0
  %241 = vmatprep.subr.mxu0 0.0
  %242 = vmatpush1.msra.mxu0 %v206
  %243 = vmatprep.subr.mxu0 0.0
  %244 = vmatpush1.msra.mxu0 %v205
  %245 = vmatprep.subr.mxu0 0.0
  %246 = vmatpush1.msra.mxu0 %v204
  %247 = vmatprep.subr.mxu0 0.0
  %248 = vmatpush1.msra.mxu0 %v203
  %249 = vmatprep.subr.mxu0 0.0
  %250 = vmatpush2.msra.mxu0 0.0
  %251 = vmatprep.subr.mxu0 0.0
  %252 = vmatpush2.msra.mxu0 0.0
  %253 = vmatprep.subr.mxu0 0.0
  %254 = vmatpush2.msra.mxu0 0.0
  %255 = vmatprep.subr.mxu0 0.0
  %256 = vmatpush2.msra.mxu0 0.0
  %257 = vmatprep.subr.mxu0 0.0
  %258 = vmatpush2.msra.mxu0 0.0
  %259 = vmatprep.subr.mxu0 0.0
  %260 = vmatpush2.msra.mxu0 0.0
  %261 = vmatprep.subr.mxu0 0.0
  %262 = vmatpush2.msra.mxu0 0.0
  %263 = vmatprep.subr.mxu0 0.0
  %264 = vmatpush2.msra.mxu0 0.0
  %265 = vmatprep.subr.mxu0 0.0
  %266 = vmatpush2.msra.mxu0 0.0
  %267 = vmatprep.subr.mxu0 0.0
  %268 = vmatpush2.msra.mxu0 0.0
  %269 = vmatprep.subr.mxu0 0.0
  %270 = vmatpush2.msra.mxu0 0.0
  %271 = vmatprep.subr.mxu0 0.0
  %272 = vmatpush2.msra.mxu0 0.0
  %273 = vmatprep.subr.mxu0 0.0
  %274 = vmatpush2.msra.mxu0 0.0
  %275 = vmatprep.subr.mxu0 0.0
  %276 = vmatpush2.msra.mxu0 0.0
  %277 = vmatprep.subr.mxu0 0.0
  %278 = vmatpush2.msra.mxu0 0.0
  %279 = vmatprep.subr.mxu0 0.0
  %280 = vmatpush2.msra.mxu0 0.0
  %281 = vmatprep.mubr.f32.mxu0 0.0
  %282 = vmatmul.mubr.f32.gmra.mxu0 %v215
  %v283 = vpop.f32.mrf.mxu0
  %v284 = vadd.f32 %v212, %v283
  %v285 = vpop.f32.mrf.mxu0
  %286 = vdwg.mxu0
  %v287 = vmax.f32 %v284, 0.0
  %vm288 = vcmask 23552
  %289 = vst.msk [vmem:[%s7] sm:$0xff] %vm288, %v287
  // Predicated region
  $region30: #{tpu_custom_call.1} parent=0 // pred_check
    _
  $region31: #{tpu_custom_call.1} parent=0 // pred_check_branch
    %291 = sbr.rel (0) target = $region33
  $region32: #{tpu_custom_call.1} parent=0 // pred_region
    _
  $region33: #{tpu_custom_call.1} parent=0 // pred_fallthru
    _
  // Predicated region
  $region34: #{tpu_custom_call.1} parent=0 // pred_check
    _
  $region35: #{tpu_custom_call.1} parent=0 // pred_check_branch
    %293 = sbr.rel (0) target = $region37
  $region36: #{tpu_custom_call.1} parent=0 // pred_region
    _
  $region37: #{tpu_custom_call.1} parent=0 // pred_fallthru
    _

</llo_original>
